<compile_context>
chip_gen: v5e
topology: v5e:2x2
jax: 0.10.0
libtpu: 0.0.40
codegen_flags: <defaults>
</compile_context>

<pallas_src>
import functools

import jax
import jax.numpy as jnp
from jax.experimental import pallas as pl
from jax.experimental.pallas import tpu as pltpu


def _round_up(v, m):
    return ((v + m - 1) // m) * m


def _cmv_kernel(x_ref, idx_ref, w1_ref, b1_ref, w2_ref, b2_ref, o_ref, *scratch,
                num_classes, out_pad, k_steps):
    # x_ref  : (TB, TK)            current batch tile (K-slab of D when k_steps > 1)
    # idx_ref: (TB, 1) int32       per-row head index
    # w1_ref : (TK, H_pad)         pre-transposed feature weight (K-slab)
    # b1_ref : (1, H_pad) f32      feature bias
    # w2_ref : (H_pad, NC*O_pad)   all heads, pre-transposed & lane-concatenated
    # b2_ref : (TB, O_pad) f32     per-row gathered head bias
    # o_ref  : (TB, O_pad)         output tile
    # scratch: (TB, H_pad) f32 accumulator, only when k_steps > 1

    def _finalize(h_acc_f32):
        # Feature epilogue: bias + ReLU in f32, cast to the MXU feed dtype.
        h = jnp.maximum(h_acc_f32 + b1_ref[...], 0.0).astype(w2_ref.dtype)
        # All heads in one matmul: (TB, H) @ (H, NC*O_pad), f32 accumulation.
        z_all = jnp.dot(h, w2_ref[...], preferred_element_type=jnp.float32)
        # Per-row head selection via lane-aligned static slices + where (NC small/static).
        idx = idx_ref[...]                                   # (TB, 1) int32
        z = z_all[:, 0:out_pad]
        for c_id in range(1, num_classes):
            z = jnp.where(idx == c_id, z_all[:, c_id * out_pad:(c_id + 1) * out_pad], z)
        z = z + b2_ref[...]                                   # gathered head bias (f32)
        # Sigmoid: exp -> EUP, approx reciprocal -> EUP (keeps the VALU free).
        o_ref[...] = pl.reciprocal(1.0 + jnp.exp(-z), approx=True).astype(o_ref.dtype)

    if k_steps == 1:
        _finalize(jnp.dot(x_ref[...], w1_ref[...], preferred_element_type=jnp.float32))
    else:
        acc_ref, = scratch
        k = pl.program_id(1)

        @pl.when(k == 0)
        def _():
            acc_ref[...] = jnp.zeros_like(acc_ref)

        acc_ref[...] += jnp.dot(x_ref[...], w1_ref[...],
                                preferred_element_type=jnp.float32)

        @pl.when(k == k_steps - 1)
        def _():
            _finalize(acc_ref[...])


def prepare_cmvnet_params(w1, b1, w2_stack, b2_stack, *,
                          compute_dtype=jnp.bfloat16,
                          block_k=512,
                          w1_resident_limit_bytes=32 << 20):
    """One-time weight preprocessing, hoisted out of the per-call path.

    w1: [H1, D_in]; b1: [H1]; w2_stack: [NC, OUT, H2]; b2_stack: [NC, OUT]."""
    H1, D_in = w1.shape
    NC, OUT, H2 = w2_stack.shape
    assert H2 == H1, "hidden2 must equal hidden1 for the forward to typecheck"

    dt = compute_dtype
    dt_bytes = jnp.dtype(dt).itemsize
    H_pad = _round_up(H1, 128)
    O_pad = _round_up(OUT, 128)

    # Resident W1 (full-extent D block, no x padding along D) vs. K-tiled W1.
    if D_in * H_pad * dt_bytes <= w1_resident_limit_bytes:
        D_pad, TK = D_in, D_in
    else:
        TK = block_k
        D_pad = _round_up(D_in, TK)
    k_steps = D_pad // TK

    w1_t = jnp.zeros((D_pad, H_pad), dt).at[:D_in, :H1].set(w1.T.astype(dt))
    b1_p = jnp.zeros((1, H_pad), jnp.float32).at[0, :H1].set(b1.astype(jnp.float32))

    # W2: [NC, OUT, H] -> padded [NC, H_pad, O_pad] -> lane-concatenated [H_pad, NC*O_pad].
    w2_p = jnp.zeros((NC, H_pad, O_pad), dt).at[:, :H1, :OUT].set(
        jnp.transpose(w2_stack, (0, 2, 1)).astype(dt))
    w2_cat = jnp.transpose(w2_p, (1, 0, 2)).reshape(H_pad, NC * O_pad)
    b2_f32 = b2_stack.astype(jnp.float32)

    return dict(w1_t=w1_t, b1=b1_p, w2_cat=w2_cat, b2=b2_f32,
                D_in=D_in, D_pad=D_pad, TK=TK, k_steps=k_steps,
                H1=H1, H_pad=H_pad, OUT=OUT, O_pad=O_pad, NC=NC,
                compute_dtype=dt)


def cmvnet_forward(params, x, num, c, *, block_b=256):
    """x: [B, D_in]; num: [B] int; c: [len_c] int  ->  out: [B, OUT] (x.dtype)."""
    B, D_in = x.shape
    assert D_in == params["D_in"]
    NC, OUT, O_pad = params["NC"], params["OUT"], params["O_pad"]
    H_pad, D_pad = params["H_pad"], params["D_pad"]
    TK, k_steps = params["TK"], params["k_steps"]
    dt = params["compute_dtype"]
    out_dtype = x.dtype

    # Per-sample head index c[num[i]]; clamped (it only feeds an in-kernel select).
    layer_idx = jnp.clip(jnp.take(c, num), 0, NC - 1).astype(jnp.int32)

    # Batch tile: >= 8, <= block_b, and >= 2 batch grid steps when B allows (v7x 2 TCs).
    B8 = _round_up(B, 8)
    TB = min(block_b, B8)
    if B8 >= 16:
        TB = min(TB, _round_up((B8 + 1) // 2, 8))
    B_pad = _round_up(B, TB)

    # Pad activations along batch only (D only when K-tiling forced a padded D).
    x_c = x.astype(dt)
    if B_pad != B or D_pad != D_in:
        x_c = jnp.pad(x_c, ((0, B_pad - B), (0, D_pad - D_in)))
    idx_p = jnp.zeros((B_pad, 1), jnp.int32).at[:B, 0].set(layer_idx)
    # Gather the per-row head bias here (trivially cheap) -> kernel adds after the select.
    b2_sel = jnp.zeros((B_pad, O_pad), jnp.float32).at[:B, :OUT].set(
        jnp.take(params["b2"], layer_idx, axis=0))

    kernel = functools.partial(_cmv_kernel, num_classes=NC, out_pad=O_pad,
                               k_steps=k_steps)
    dt_bytes = jnp.dtype(dt).itemsize
    out_bytes = jnp.dtype(out_dtype).itemsize

    def launch(single_buffer_weights):
        resident_mode = ({"pipeline_mode": pl.Buffered(1)}
                         if single_buffer_weights else {})
        w1_mode = resident_mode if k_steps == 1 else {}
        w1_bufs = 1 if (k_steps == 1 and single_buffer_weights) else 2
        wb = 1 if single_buffer_weights else 2

        # VMEM residency estimate (double buffers where pipelined) + headroom,
        # capped below the physical VMEM of the chip we are actually running on.
        resident = (
            2 * TB * TK * dt_bytes                      # x tile
            + 2 * TB * 128 * 4                          # head-idx tile (lane padded)
            + w1_bufs * TK * H_pad * dt_bytes           # W1
            + wb * 8 * H_pad * 4                        # b1 (f32)
            + wb * H_pad * NC * O_pad * dt_bytes        # W2 (all heads)
            + 2 * TB * O_pad * 4                        # gathered b2 tile
            + 2 * TB * O_pad * out_bytes                # output tile
            + TB * H_pad * 4                            # f32 h accumulator / intermediate
            + TB * NC * O_pad * 4                       # z_all intermediate
        )
        try:
            vmem_cap = int(getattr(pltpu.get_tpu_info(), "vmem_capacity_bytes",
                                   64 << 20))
        except Exception:
            vmem_cap = 64 << 20
        vmem_limit = int(min(max(2 * resident, 32 << 20), 0.9 * vmem_cap))

        grid_spec = pltpu.PrefetchScalarGridSpec(
            num_scalar_prefetch=0,
            grid=(B_pad // TB, k_steps),
            in_specs=[
                pl.BlockSpec((TB, TK), lambda i, k: (i, k)),                     # x tile
                pl.BlockSpec((TB, 1), lambda i, k: (i, 0)),                      # head idx
                pl.BlockSpec((TK, H_pad), lambda i, k: (k, 0), **w1_mode),       # W1
                pl.BlockSpec((1, H_pad), lambda i, k: (0, 0), **resident_mode),  # b1
                pl.BlockSpec((H_pad, NC * O_pad), lambda i, k: (0, 0),
                             **resident_mode),                                   # W2
                pl.BlockSpec((TB, O_pad), lambda i, k: (i, 0)),                  # b2 gather
            ],
            out_specs=pl.BlockSpec((TB, O_pad), lambda i, k: (i, 0)),
            scratch_shapes=([pltpu.VMEM((TB, H_pad), jnp.float32)]
                            if k_steps > 1 else []),
        )
        return pl.pallas_call(
            kernel,
            out_shape=jax.ShapeDtypeStruct((B_pad, O_pad), out_dtype),
            grid_spec=grid_spec,
            compiler_params=pltpu.CompilerParams(
                dimension_semantics=("parallel", "arbitrary"),
                vmem_limit_bytes=vmem_limit),
        )(x_c, idx_p, params["w1_t"], params["b1"], params["w2_cat"], b2_sel)

    try:
        out = jax.block_until_ready(launch(single_buffer_weights=True))
    except Exception:
        # pipeline_mode=pl.Buffered(1) not accepted on this jax build: fall back to
        # default double-buffering (identical numerics, just more resident VMEM).
        out = jax.block_until_ready(launch(single_buffer_weights=False))

    return out[:B, :OUT]


if __name__ == "__main__":
    # CMVNet(input=32, hidden1=32, hidden2=32, output=16, num_classes=4); batch=8, len(c)=6.
    B, D_IN, H1, OUT, NUM_CLASSES, LEN_C = 8, 32, 32, 16, 4, 6
    H2 = H1

    key = jax.random.PRNGKey(0)
    ks = jax.random.split(key, 8)
    x = jax.random.normal(ks[0], (B, D_IN), jnp.float32)
    w1 = jax.random.normal(ks[1], (H1, D_IN), jnp.float32) * 0.1
    b1 = jax.random.normal(ks[2], (H1,), jnp.float32) * 0.1
    w2_stack = jax.random.normal(ks[3], (NUM_CLASSES, OUT, H2), jnp.float32) * 0.1
    b2_stack = jax.random.normal(ks[4], (NUM_CLASSES, OUT), jnp.float32) * 0.1
    c = jax.random.randint(ks[5], (LEN_C,), 0, NUM_CLASSES, jnp.int32)
    num = jax.random.randint(ks[6], (B,), 0, LEN_C, jnp.int32)

    params = prepare_cmvnet_params(w1, b1, w2_stack, b2_stack)   # one-time weight prep
    out = jax.block_until_ready(cmvnet_forward(params, x, num, c))

    # Pure-JAX reference (mirrors the PyTorch forward exactly), f32.
    h_ref = jnp.maximum(x @ w1.T + b1, 0.0)
    k_ref = jnp.take(c, num)
    ref = jax.nn.sigmoid(
        jnp.einsum("bh,boh->bo", h_ref, w2_stack[k_ref]) + b2_stack[k_ref])

    assert out.shape == (B, OUT)
    # bf16 MXU feeds + approx reciprocal -> tolerance loosened vs the f32 reference.
    assert jnp.allclose(out, ref, atol=2e-2, rtol=2e-2), "mismatch vs reference"
    print("KERNEL_OK")
</pallas_src>

<mosaic_0001>
module attributes {stable_mosaic.version = 11 : i64} {
  func.func @_cmv_kernel(%arg0: i32, %arg1: i32, %arg2: memref<8x32xbf16, #tpu.memory_space<vmem>>, %arg3: memref<8x1xi32, #tpu.memory_space<vmem>>, %arg4: memref<32x128xbf16, #tpu.memory_space<vmem>>, %arg5: memref<1x128xf32, #tpu.memory_space<vmem>>, %arg6: memref<128x512xbf16, #tpu.memory_space<vmem>>, %arg7: memref<8x128xf32, #tpu.memory_space<vmem>>, %arg8: memref<8x128xf32, #tpu.memory_space<vmem>>) attributes {dimension_semantics = [#tpu.dimension_semantics<parallel>, #tpu.dimension_semantics<arbitrary>], iteration_bounds = array<i64: 1, 1>, scalar_prefetch = 0 : i64, scratch_operands = 0 : i64, tpu.core_type = #tpu.core_type<tc>, window_params = [{transform_indices = @transform_0, window_bounds = array<i64: 8, 32>}, {transform_indices = @transform_1, window_bounds = array<i64: 8, 1>}, {pipeline_mode = #tpu.pipeline_mode<synchronous>, transform_indices = @transform_2, window_bounds = array<i64: 32, 128>}, {pipeline_mode = #tpu.pipeline_mode<synchronous>, transform_indices = @transform_3, window_bounds = array<i64: 1, 128>}, {pipeline_mode = #tpu.pipeline_mode<synchronous>, transform_indices = @transform_4, window_bounds = array<i64: 128, 512>}, {transform_indices = @transform_5, window_bounds = array<i64: 8, 128>}, {transform_indices = @transform_6, window_bounds = array<i64: 8, 128>}]} {
    %c0 = arith.constant 0 : index
    %c0_0 = arith.constant 0 : index
    %0 = vector.load %arg2[%c0, %c0_0] : memref<8x32xbf16, #tpu.memory_space<vmem>>, vector<8x32xbf16>
    %c0_1 = arith.constant 0 : index
    %c0_2 = arith.constant 0 : index
    %1 = vector.load %arg4[%c0_1, %c0_2] : memref<32x128xbf16, #tpu.memory_space<vmem>>, vector<32x128xbf16>
    %cst = arith.constant dense<0.000000e+00> : vector<8x128xf32>
    %2 = tpu.matmul %0, %1, %cst {dimension_numbers = #tpu.dot_dimension_numbers<[1], [0], [0], [1], [0, 0, 1, 1], [], []>} : vector<8x32xbf16>, vector<32x128xbf16>, vector<8x128xf32> -> vector<8x128xf32>
    %c0_3 = arith.constant 0 : index
    %c0_4 = arith.constant 0 : index
    %3 = vector.load %arg5[%c0_3, %c0_4] : memref<1x128xf32, #tpu.memory_space<vmem>>, vector<1x128xf32>
    %4 = vector.broadcast %3 : vector<1x128xf32> to vector<8x128xf32>
    %5 = arith.addf %2, %4 : vector<8x128xf32>
    %cst_5 = arith.constant 0.000000e+00 : f32
    %6 = vector.broadcast %cst_5 : f32 to vector<8x128xf32>
    %7 = arith.maximumf %5, %6 : vector<8x128xf32>
    %8 = arith.truncf %7 : vector<8x128xf32> to vector<8x128xbf16>
    %c0_6 = arith.constant 0 : index
    %c0_7 = arith.constant 0 : index
    %9 = vector.load %arg6[%c0_6, %c0_7] : memref<128x512xbf16, #tpu.memory_space<vmem>>, vector<128x512xbf16>
    %cst_8 = arith.constant dense<0.000000e+00> : vector<8x512xf32>
    %10 = tpu.matmul %8, %9, %cst_8 {dimension_numbers = #tpu.dot_dimension_numbers<[1], [0], [0], [1], [0, 0, 1, 1], [], []>} : vector<8x128xbf16>, vector<128x512xbf16>, vector<8x512xf32> -> vector<8x512xf32>
    %c0_9 = arith.constant 0 : index
    %c0_10 = arith.constant 0 : index
    %11 = vector.load %arg3[%c0_9, %c0_10] : memref<8x1xi32, #tpu.memory_space<vmem>>, vector<8x1xi32>
    %12 = vector.extract_strided_slice %10 {offsets = [0, 0], sizes = [8, 128], strides = [1, 1]} : vector<8x512xf32> to vector<8x128xf32>
    %c1_i32 = arith.constant 1 : i32
    %13 = vector.broadcast %c1_i32 : i32 to vector<8x1xi32>
    %14 = arith.cmpi eq, %11, %13 : vector<8x1xi32>
    %15 = vector.extract_strided_slice %10 {offsets = [0, 128], sizes = [8, 128], strides = [1, 1]} : vector<8x512xf32> to vector<8x128xf32>
    %16 = vector.shape_cast %14 : vector<8x1xi1> to vector<8x1xi1>
    %17 = vector.broadcast %16 : vector<8x1xi1> to vector<8x128xi1>
    %18 = arith.select %17, %15, %12 : vector<8x128xi1>, vector<8x128xf32>
    %c2_i32 = arith.constant 2 : i32
    %19 = vector.broadcast %c2_i32 : i32 to vector<8x1xi32>
    %20 = arith.cmpi eq, %11, %19 : vector<8x1xi32>
    %21 = vector.extract_strided_slice %10 {offsets = [0, 256], sizes = [8, 128], strides = [1, 1]} : vector<8x512xf32> to vector<8x128xf32>
    %22 = vector.shape_cast %20 : vector<8x1xi1> to vector<8x1xi1>
    %23 = vector.broadcast %22 : vector<8x1xi1> to vector<8x128xi1>
    %24 = arith.select %23, %21, %18 : vector<8x128xi1>, vector<8x128xf32>
    %c3_i32 = arith.constant 3 : i32
    %25 = vector.broadcast %c3_i32 : i32 to vector<8x1xi32>
    %26 = arith.cmpi eq, %11, %25 : vector<8x1xi32>
    %27 = vector.extract_strided_slice %10 {offsets = [0, 384], sizes = [8, 128], strides = [1, 1]} : vector<8x512xf32> to vector<8x128xf32>
    %28 = vector.shape_cast %26 : vector<8x1xi1> to vector<8x1xi1>
    %29 = vector.broadcast %28 : vector<8x1xi1> to vector<8x128xi1>
    %30 = arith.select %29, %27, %24 : vector<8x128xi1>, vector<8x128xf32>
    %c0_11 = arith.constant 0 : index
    %c0_12 = arith.constant 0 : index
    %31 = vector.load %arg7[%c0_11, %c0_12] : memref<8x128xf32, #tpu.memory_space<vmem>>, vector<8x128xf32>
    %32 = arith.addf %30, %31 : vector<8x128xf32>
    %cst_13 = arith.constant 0.000000e+00 : f32
    %33 = vector.broadcast %cst_13 : f32 to vector<8x128xf32>
    %34 = arith.subf %33, %32 : vector<8x128xf32>
    %35 = math.exp %34 : vector<8x128xf32>
    %cst_14 = arith.constant 1.000000e+00 : f32
    %36 = vector.broadcast %cst_14 : f32 to vector<8x128xf32>
    %37 = arith.addf %36, %35 : vector<8x128xf32>
    %38 = tpu.reciprocal %37 {approx = true} : vector<8x128xf32> -> vector<8x128xf32>
    %c0_15 = arith.constant 0 : index
    %c0_16 = arith.constant 0 : index
    %39 = vector.load %arg8[%c0_15, %c0_16] : memref<8x128xf32, #tpu.memory_space<vmem>>, vector<8x128xf32>
    tpu.vector_store %arg8[%c0_15, %c0_16], %38 {strides = array<i32>} : memref<8x128xf32, #tpu.memory_space<vmem>>, vector<8x128xf32>,
    return
  }
  func.func @transform_0(%arg0: i32, %arg1: i32) -> (i32, i32) {
    %c0_i32 = arith.constant 0 : i32
    return %arg0, %arg1 : i32, i32
  }
  func.func @transform_1(%arg0: i32, %arg1: i32) -> (i32, i32) {
    %c0_i32 = arith.constant 0 : i32
    %c0_i32_0 = arith.constant 0 : i32
    return %arg0, %c0_i32 : i32, i32
  }
  func.func @transform_2(%arg0: i32, %arg1: i32) -> (i32, i32) {
    %c0_i32 = arith.constant 0 : i32
    %c0_i32_0 = arith.constant 0 : i32
    return %arg1, %c0_i32 : i32, i32
  }
  func.func @transform_3(%arg0: i32, %arg1: i32) -> (i32, i32) {
    %c0_i32 = arith.constant 0 : i32
    %c0_i32_0 = arith.constant 0 : i32
    %c0_i32_1 = arith.constant 0 : i32
    return %c0_i32, %c0_i32_0 : i32, i32
  }
  func.func @transform_4(%arg0: i32, %arg1: i32) -> (i32, i32) {
    %c0_i32 = arith.constant 0 : i32
    %c0_i32_0 = arith.constant 0 : i32
    %c0_i32_1 = arith.constant 0 : i32
    return %c0_i32, %c0_i32_0 : i32, i32
  }
  func.func @transform_5(%arg0: i32, %arg1: i32) -> (i32, i32) {
    %c0_i32 = arith.constant 0 : i32
    %c0_i32_0 = arith.constant 0 : i32
    return %arg0, %c0_i32 : i32, i32
  }
  func.func @transform_6(%arg0: i32, %arg1: i32) -> (i32, i32) {
    %c0_i32 = arith.constant 0 : i32
    %c0_i32_0 = arith.constant 0 : i32
    return %arg0, %c0_i32 : i32, i32
  }
}

module attributes {stable_mosaic.version = 11 : i64} {
  func.func @_cmv_kernel(%arg0: i32, %arg1: i32, %arg2: memref<8x32xbf16, #tpu.memory_space<vmem>>, %arg3: memref<8x1xi32, #tpu.memory_space<vmem>>, %arg4: memref<32x128xbf16, #tpu.memory_space<vmem>>, %arg5: memref<1x128xf32, #tpu.memory_space<vmem>>, %arg6: memref<128x512xbf16, #tpu.memory_space<vmem>>, %arg7: memref<8x128xf32, #tpu.memory_space<vmem>>, %arg8: memref<8x128xf32, #tpu.memory_space<vmem>>) attributes {dimension_semantics = [#tpu.dimension_semantics<parallel>, #tpu.dimension_semantics<arbitrary>], iteration_bounds = array<i64: 1, 1>, scalar_prefetch = 0 : i64, scratch_operands = 0 : i64, tpu.core_type = #tpu.core_type<tc>, window_params = [{transform_indices = @transform_0, window_bounds = array<i64: 8, 32>}, {transform_indices = @transform_1, window_bounds = array<i64: 8, 1>}, {transform_indices = @transform_2, window_bounds = array<i64: 32, 128>}, {pipeline_mode = #tpu.pipeline_mode<synchronous>, transform_indices = @transform_3, window_bounds = array<i64: 1, 128>}, {pipeline_mode = #tpu.pipeline_mode<synchronous>, transform_indices = @transform_4, window_bounds = array<i64: 128, 512>}, {transform_indices = @transform_5, window_bounds = array<i64: 8, 128>}, {transform_indices = @transform_6, window_bounds = array<i64: 8, 128>}]} {
    %c0 = arith.constant 0 : index
    %c0_0 = arith.constant 0 : index
    %0 = vector.load %arg2[%c0, %c0_0] : memref<8x32xbf16, #tpu.memory_space<vmem>>, vector<8x32xbf16>
    %c0_1 = arith.constant 0 : index
    %c0_2 = arith.constant 0 : index
    %1 = vector.load %arg4[%c0_1, %c0_2] : memref<32x128xbf16, #tpu.memory_space<vmem>>, vector<32x128xbf16>
    %cst = arith.constant dense<0.000000e+00> : vector<8x128xf32>
    %2 = tpu.matmul %0, %1, %cst {dimension_numbers = #tpu.dot_dimension_numbers<[1], [0], [0], [1], [0, 0, 1, 1], [], []>} : vector<8x32xbf16>, vector<32x128xbf16>, vector<8x128xf32> -> vector<8x128xf32>
    %c0_3 = arith.constant 0 : index
    %c0_4 = arith.constant 0 : index
    %3 = vector.load %arg5[%c0_3, %c0_4] : memref<1x128xf32, #tpu.memory_space<vmem>>, vector<1x128xf32>
    %4 = vector.broadcast %3 : vector<1x128xf32> to vector<8x128xf32>
    %5 = arith.addf %2, %4 : vector<8x128xf32>
    %cst_5 = arith.constant 0.000000e+00 : f32
    %6 = vector.broadcast %cst_5 : f32 to vector<8x128xf32>
    %7 = arith.maximumf %5, %6 : vector<8x128xf32>
    %8 = arith.truncf %7 : vector<8x128xf32> to vector<8x128xbf16>
    %c0_6 = arith.constant 0 : index
    %c0_7 = arith.constant 0 : index
    %9 = vector.load %arg6[%c0_6, %c0_7] : memref<128x512xbf16, #tpu.memory_space<vmem>>, vector<128x512xbf16>
    %cst_8 = arith.constant dense<0.000000e+00> : vector<8x512xf32>
    %10 = tpu.matmul %8, %9, %cst_8 {dimension_numbers = #tpu.dot_dimension_numbers<[1], [0], [0], [1], [0, 0, 1, 1], [], []>} : vector<8x128xbf16>, vector<128x512xbf16>, vector<8x512xf32> -> vector<8x512xf32>
    %c0_9 = arith.constant 0 : index
    %c0_10 = arith.constant 0 : index
    %11 = vector.load %arg3[%c0_9, %c0_10] : memref<8x1xi32, #tpu.memory_space<vmem>>, vector<8x1xi32>
    %12 = vector.extract_strided_slice %10 {offsets = [0, 0], sizes = [8, 128], strides = [1, 1]} : vector<8x512xf32> to vector<8x128xf32>
    %c1_i32 = arith.constant 1 : i32
    %13 = vector.broadcast %c1_i32 : i32 to vector<8x1xi32>
    %14 = arith.cmpi eq, %11, %13 : vector<8x1xi32>
    %15 = vector.extract_strided_slice %10 {offsets = [0, 128], sizes = [8, 128], strides = [1, 1]} : vector<8x512xf32> to vector<8x128xf32>
    %16 = vector.shape_cast %14 : vector<8x1xi1> to vector<8x1xi1>
    %17 = vector.broadcast %16 : vector<8x1xi1> to vector<8x128xi1>
    %18 = arith.select %17, %15, %12 : vector<8x128xi1>, vector<8x128xf32>
    %c2_i32 = arith.constant 2 : i32
    %19 = vector.broadcast %c2_i32 : i32 to vector<8x1xi32>
    %20 = arith.cmpi eq, %11, %19 : vector<8x1xi32>
    %21 = vector.extract_strided_slice %10 {offsets = [0, 256], sizes = [8, 128], strides = [1, 1]} : vector<8x512xf32> to vector<8x128xf32>
    %22 = vector.shape_cast %20 : vector<8x1xi1> to vector<8x1xi1>
    %23 = vector.broadcast %22 : vector<8x1xi1> to vector<8x128xi1>
    %24 = arith.select %23, %21, %18 : vector<8x128xi1>, vector<8x128xf32>
    %c3_i32 = arith.constant 3 : i32
    %25 = vector.broadcast %c3_i32 : i32 to vector<8x1xi32>
    %26 = arith.cmpi eq, %11, %25 : vector<8x1xi32>
    %27 = vector.extract_strided_slice %10 {offsets = [0, 384], sizes = [8, 128], strides = [1, 1]} : vector<8x512xf32> to vector<8x128xf32>
    %28 = vector.shape_cast %26 : vector<8x1xi1> to vector<8x1xi1>
    %29 = vector.broadcast %28 : vector<8x1xi1> to vector<8x128xi1>
    %30 = arith.select %29, %27, %24 : vector<8x128xi1>, vector<8x128xf32>
    %c0_11 = arith.constant 0 : index
    %c0_12 = arith.constant 0 : index
    %31 = vector.load %arg7[%c0_11, %c0_12] : memref<8x128xf32, #tpu.memory_space<vmem>>, vector<8x128xf32>
    %32 = arith.addf %30, %31 : vector<8x128xf32>
    %cst_13 = arith.constant 0.000000e+00 : f32
    %33 = vector.broadcast %cst_13 : f32 to vector<8x128xf32>
    %34 = arith.subf %33, %32 : vector<8x128xf32>
    %35 = math.exp %34 : vector<8x128xf32>
    %cst_14 = arith.constant 1.000000e+00 : f32
    %36 = vector.broadcast %cst_14 : f32 to vector<8x128xf32>
    %37 = arith.addf %36, %35 : vector<8x128xf32>
    %38 = tpu.reciprocal %37 {approx = true} : vector<8x128xf32> -> vector<8x128xf32>
    %c0_15 = arith.constant 0 : index
    %c0_16 = arith.constant 0 : index
    %39 = vector.load %arg8[%c0_15, %c0_16] : memref<8x128xf32, #tpu.memory_space<vmem>>, vector<8x128xf32>
    tpu.vector_store %arg8[%c0_15, %c0_16], %38 {strides = array<i32>} : memref<8x128xf32, #tpu.memory_space<vmem>>, vector<8x128xf32>,
    return
  }
  func.func @transform_0(%arg0: i32, %arg1: i32) -> (i32, i32) {
    %c0_i32 = arith.constant 0 : i32
    return %arg0, %arg1 : i32, i32
  }
  func.func @transform_1(%arg0: i32, %arg1: i32) -> (i32, i32) {
    %c0_i32 = arith.constant 0 : i32
    %c0_i32_0 = arith.constant 0 : i32
    return %arg0, %c0_i32 : i32, i32
  }
  func.func @transform_2(%arg0: i32, %arg1: i32) -> (i32, i32) {
    %c0_i32 = arith.constant 0 : i32
    %c0_i32_0 = arith.constant 0 : i32
    return %arg1, %c0_i32 : i32, i32
  }
  func.func @transform_3(%arg0: i32, %arg1: i32) -> (i32, i32) {
    %c0_i32 = arith.constant 0 : i32
    %c0_i32_0 = arith.constant 0 : i32
    %c0_i32_1 = arith.constant 0 : i32
    return %c0_i32, %c0_i32_0 : i32, i32
  }
  func.func @transform_4(%arg0: i32, %arg1: i32) -> (i32, i32) {
    %c0_i32 = arith.constant 0 : i32
    %c0_i32_0 = arith.constant 0 : i32
    %c0_i32_1 = arith.constant 0 : i32
    return %c0_i32, %c0_i32_0 : i32, i32
  }
  func.func @transform_5(%arg0: i32, %arg1: i32) -> (i32, i32) {
    %c0_i32 = arith.constant 0 : i32
    %c0_i32_0 = arith.constant 0 : i32
    return %arg0, %c0_i32 : i32, i32
  }
  func.func @transform_6(%arg0: i32, %arg1: i32) -> (i32, i32) {
    %c0_i32 = arith.constant 0 : i32
    %c0_i32_0 = arith.constant 0 : i32
    return %arg0, %c0_i32 : i32, i32
  }
}

</mosaic_0001>

<llo_original>
// kernel: tpu_custom_call.1
$region0: #{tpu_custom_call.1}
  #allocation0 [shape = 'u32[]', space=smem, size = 0x4, offset = 0x4, fixed_abs, tag = 'smem constant byte address 0x4 - core index']
  #allocation1 [shape = 'u32[72,128]{1,0:T(1,128)}', space=vmem, size = 0x9000, scoped, tag = 'internal scratch']
  %s0 = inlined_call_operand.vmem [shape: bf16[8,32], index: 0, kind: input, shape index: {}]
  %s1 = inlined_call_operand.vmem [shape: s32[8,1], index: 1, kind: input, shape index: {}]
  %s2 = inlined_call_operand.hbm [shape: bf16[32,128], index: 2, kind: input, shape index: {}]
  %s3 = inlined_call_operand.vmem [shape: f32[1,128], index: 3, kind: input, shape index: {}]
  %s4 = inlined_call_operand.hbm [shape: bf16[128,512], index: 4, kind: input, shape index: {}]
  %s5 = inlined_call_operand.vmem [shape: f32[8,128], index: 5, kind: input, shape index: {}]
  %s6 = inlined_call_operand.hbm [shape: f32[8,128], index: 6, kind: output, shape index: {}]
  %s7 = sld [smem:[#allocation0]]
  $region42: #{tpu_custom_call.1} parent=0
    _
  %s9 = ssub.s32 1, %s7
  %s10 = scalar_select 0, %s9, %s7
  $region1: #{tpu_custom_call.1} parent=0
    #allocation2 [shape = 'u8[8192]{0}', space=vmem, size = 0x2000, scoped, tag = 'input window, operand 2, single buffered']
    #allocation3 [shape = 's32[1]{0}', space=sflag, size = 0x4, scoped, tag = 'scoped memory for tpu_custom_call.1']
    #allocation4 [shape = 's32[1]{0}', space=sflag, size = 0x4, scoped, tag = 'scoped memory for tpu_custom_call.1']
    #allocation5 [shape = 'u8[131072]{0}', space=vmem, size = 0x20000, scoped, tag = 'input window, operand 4, single buffered']
    #allocation6 [shape = 's32[1]{0}', space=sflag, size = 0x4, scoped, tag = 'scoped memory for tpu_custom_call.1']
    #allocation7 [shape = 'u8[4096]{0}', space=vmem, size = 0x1000, scoped, tag = 'output window, operand 0, single buffered']
    %11 = vsyncpa [#allocation3], 0
    %12 = vsyncpa [#allocation6], 0
    %13 = vsyncpa [#allocation4], 0
    // Predicated region
    $region2: #{tpu_custom_call.1} parent=1 // pred_check
      _
    $region3: #{tpu_custom_call.1} parent=1 // pred_check_branch
      %15 = sbr.rel (0) target = $region5
    $region4: #{tpu_custom_call.1} parent=1 // pred_region
      _
    $region5: #{tpu_custom_call.1} parent=1 // pred_fallthru
      _
    // Predicated region
    $region6: #{tpu_custom_call.1} parent=1 // pred_check
      _
    $region7: #{tpu_custom_call.1} parent=1 // pred_check_branch
      %17 = sbr.rel (0) target = $region9
    $region8: #{tpu_custom_call.1} parent=1 // pred_region
      _
    $region9: #{tpu_custom_call.1} parent=1 // pred_fallthru
      _
    // Predicated region
    $region10: #{tpu_custom_call.1} parent=1 // pred_check
      _
    $region11: #{tpu_custom_call.1} parent=1 // pred_check_branch
      %19 = sbr.rel (0) target = $region13
    $region12: #{tpu_custom_call.1} parent=1 // pred_region
      %21 = vsyncadd [#allocation3], 0
      %s22 = sshll.u32 %s2, 4
      %s23 = int_to_ptr.hbm [resolvable:$true] %s22
      %s24 = sshll.u32 [#allocation2], 4
      %s25 = int_to_ptr.vmem [resolvable:$true] %s24
      %30 = dma.hbm_to_vmem [thread:$0]  %s23, 256, %s25, [#allocation3], 64, 64, 4
    $region13: #{tpu_custom_call.1} parent=1 // pred_fallthru
      _
    // Predicated region
    $region14: #{tpu_custom_call.1} parent=1 // pred_check
      _
    $region15: #{tpu_custom_call.1} parent=1 // pred_check_branch
      %32 = sbr.rel (0) target = $region17
    $region16: #{tpu_custom_call.1} parent=1 // pred_region
      _
    $region17: #{tpu_custom_call.1} parent=1 // pred_fallthru
      _
    // Predicated region
    $region18: #{tpu_custom_call.1} parent=1 // pred_check
      _
    $region19: #{tpu_custom_call.1} parent=1 // pred_check_branch
      %34 = sbr.rel (0) target = $region21
    $region20: #{tpu_custom_call.1} parent=1 // pred_region
      %36 = vsyncadd [#allocation6], 0
      %s37 = sshll.u32 %s4, 4
      %s38 = int_to_ptr.hbm [resolvable:$true] %s37
      %s39 = sshll.u32 [#allocation5], 4
      %s40 = int_to_ptr.vmem [resolvable:$true] %s39
      %45 = dma.hbm_to_vmem [thread:$0]  %s38, 4096, %s40, [#allocation6], 256, 256, 16
    $region21: #{tpu_custom_call.1} parent=1 // pred_fallthru
      _
    // Predicated region
    $region22: #{tpu_custom_call.1} parent=1 // pred_check
      _
    $region23: #{tpu_custom_call.1} parent=1 // pred_check_branch
      %47 = sbr.rel (0) target = $region25
    $region24: #{tpu_custom_call.1} parent=1 // pred_region
      _
    $region25: #{tpu_custom_call.1} parent=1 // pred_fallthru
      _
    // Predicated region
    $region26: #{tpu_custom_call.1} parent=1 // pred_check
      _
    $region27: #{tpu_custom_call.1} parent=1 // pred_check_branch
      %49 = sbr.rel (0) target = $region29
    $region28: #{tpu_custom_call.1} parent=1 // pred_region
      %51 = dma.done [#allocation3], 256
    $region29: #{tpu_custom_call.1} parent=1 // pred_fallthru
      _
    // Predicated region
    $region30: #{tpu_custom_call.1} parent=1 // pred_check
      _
    $region31: #{tpu_custom_call.1} parent=1 // pred_check_branch
      %53 = sbr.rel (0) target = $region33
    $region32: #{tpu_custom_call.1} parent=1 // pred_region
      %55 = dma.done [#allocation6], 4096
    $region33: #{tpu_custom_call.1} parent=1 // pred_fallthru
      _
    %v57 = vld [vmem:[%s0] sm:$0xf]
    %v58 = vld [vmem:[#allocation2] sm:$0xf]
    %v59 = vld [vmem:[#allocation2 + $0x4] sm:$0xf]
    %v60 = vld [vmem:[#allocation2 + $0x8] sm:$0xf]
    %v61 = vld [vmem:[#allocation2 + $0xc] sm:$0xf]
    %v62 = vld [vmem:[%s3] sm:$0x1]
    %v64 = vperm.slane %v62, 0
    %v70 = vunpack.c.l.b16 %v58
    %v71 = vunpack.c.l.b16 %v59
    %v72 = vunpack.c.l.b16 %v60
    %v73 = vunpack.c.l.b16 %v61
    %v74 = vpack.c.b16 %v71, %v70
    %v75 = vpack.c.b16 %v73, %v72
    %vm78 = vcmask 261120
    %v80 = vsel %vm78, %v57, 0
    %82 = vmatpush.bf16.msra.mxu0 0
    %83 = vmatpush.bf16.msra.mxu0 0
    %84 = vmatpush.bf16.msra.mxu0 0
    %85 = vmatpush.bf16.msra.mxu0 0
    %86 = vmatpush.bf16.msra.mxu0 0
    %87 = vmatpush.bf16.msra.mxu0 0
    %88 = vmatpush.bf16.msra.mxu0 %v75
    %89 = vmatpush.bf16.msra.mxu0 %v74
    %90 = vmatmul.bf16.gmra.mxu0 %v80
    %v91 = vpop.f32.mrf.mxu0
    %v92 = vadd.f32 %v64, %v91
    %v93 = vpop.f32.mrf.mxu0
    %94 = vdwg.mxu0
    %v95 = vmax.f32 %v92, 0.0
    %v96 = vpack.c.bf16 %v95, %v95
    %v97 = vld [vmem:[#allocation5] sm:$0xff]
    %v98 = vld [vmem:[#allocation5 + $0x8] sm:$0xff]
    %v99 = vld [vmem:[#allocation5 + $0x10] sm:$0xff]
    %v100 = vld [vmem:[#allocation5 + $0x18] sm:$0xff]
    %v101 = vld [vmem:[#allocation5 + $0x20] sm:$0xff]
    %v102 = vld [vmem:[#allocation5 + $0x28] sm:$0xff]
    %v103 = vld [vmem:[#allocation5 + $0x30] sm:$0xff]
    %v104 = vld [vmem:[#allocation5 + $0x38] sm:$0xff]
    %v105 = vld [vmem:[#allocation5 + $0x40] sm:$0xff]
    %v106 = vld [vmem:[#allocation5 + $0x48] sm:$0xff]
    %v107 = vld [vmem:[#allocation5 + $0x50] sm:$0xff]
    %v108 = vld [vmem:[#allocation5 + $0x58] sm:$0xff]
    %v109 = vld [vmem:[#allocation5 + $0x60] sm:$0xff]
    %v110 = vld [vmem:[#allocation5 + $0x68] sm:$0xff]
    %v111 = vld [vmem:[#allocation5 + $0x70] sm:$0xff]
    %v112 = vld [vmem:[#allocation5 + $0x78] sm:$0xff]
    %v113 = vld [vmem:[#allocation5 + $0x80] sm:$0xff]
    %v114 = vld [vmem:[#allocation5 + $0x88] sm:$0xff]
    %v115 = vld [vmem:[#allocation5 + $0x90] sm:$0xff]
    %v116 = vld [vmem:[#allocation5 + $0x98] sm:$0xff]
    %v117 = vld [vmem:[#allocation5 + $0xa0] sm:$0xff]
    %v118 = vld [vmem:[#allocation5 + $0xa8] sm:$0xff]
    %v119 = vld [vmem:[#allocation5 + $0xb0] sm:$0xff]
    %v120 = vld [vmem:[#allocation5 + $0xb8] sm:$0xff]
    %v121 = vld [vmem:[#allocation5 + $0xc0] sm:$0xff]
    %v122 = vld [vmem:[#allocation5 + $0xc8] sm:$0xff]
    %v123 = vld [vmem:[#allocation5 + $0xd0] sm:$0xff]
    %v124 = vld [vmem:[#allocation5 + $0xd8] sm:$0xff]
    %v125 = vld [vmem:[#allocation5 + $0xe0] sm:$0xff]
    %v126 = vld [vmem:[#allocation5 + $0xe8] sm:$0xff]
    %v127 = vld [vmem:[#allocation5 + $0xf0] sm:$0xff]
    %v128 = vld [vmem:[#allocation5 + $0xf8] sm:$0xff]
    %v161 = vunpack.c.l.b16 %v97
    %v162 = vunpack.c.h.b16 %v97
    %v163 = vunpack.c.l.b16 %v98
    %v164 = vunpack.c.h.b16 %v98
    %v165 = vunpack.c.l.b16 %v99
    %v166 = vunpack.c.h.b16 %v99
    %v167 = vunpack.c.l.b16 %v100
    %v168 = vunpack.c.h.b16 %v100
    %v169 = vunpack.c.l.b16 %v101
    %v170 = vunpack.c.h.b16 %v101
    %v171 = vunpack.c.l.b16 %v102
    %v172 = vunpack.c.h.b16 %v102
    %v173 = vunpack.c.l.b16 %v103
    %v174 = vunpack.c.h.b16 %v103
    %v175 = vunpack.c.l.b16 %v104
    %v176 = vunpack.c.h.b16 %v104
    %v177 = vunpack.c.l.b16 %v105
    %v178 = vunpack.c.h.b16 %v105
    %v179 = vunpack.c.l.b16 %v106
    %v180 = vunpack.c.h.b16 %v106
    %v181 = vunpack.c.l.b16 %v107
    %v182 = vunpack.c.h.b16 %v107
    %v183 = vunpack.c.l.b16 %v108
    %v184 = vunpack.c.h.b16 %v108
    %v185 = vunpack.c.l.b16 %v109
    %v186 = vunpack.c.h.b16 %v109
    %v187 = vunpack.c.l.b16 %v110
    %v188 = vunpack.c.h.b16 %v110
    %v189 = vunpack.c.l.b16 %v111
    %v190 = vunpack.c.h.b16 %v111
    %v191 = vunpack.c.l.b16 %v112
    %v192 = vunpack.c.h.b16 %v112
    %v193 = vunpack.c.l.b16 %v113
    %v194 = vunpack.c.h.b16 %v113
    %v195 = vunpack.c.l.b16 %v114
    %v196 = vunpack.c.h.b16 %v114
    %v197 = vunpack.c.l.b16 %v115
    %v198 = vunpack.c.h.b16 %v115
    %v199 = vunpack.c.l.b16 %v116
    %v200 = vunpack.c.h.b16 %v116
    %v201 = vunpack.c.l.b16 %v117
    %v202 = vunpack.c.h.b16 %v117
    %v203 = vunpack.c.l.b16 %v118
    %v204 = vunpack.c.h.b16 %v118
    %v205 = vunpack.c.l.b16 %v119
    %v206 = vunpack.c.h.b16 %v119
    %v207 = vunpack.c.l.b16 %v120
    %v208 = vunpack.c.h.b16 %v120
    %v209 = vunpack.c.l.b16 %v121
    %v210 = vunpack.c.h.b16 %v121
    %v211 = vunpack.c.l.b16 %v122
    %v212 = vunpack.c.h.b16 %v122
    %v213 = vunpack.c.l.b16 %v123
    %v214 = vunpack.c.h.b16 %v123
    %v215 = vunpack.c.l.b16 %v124
    %v216 = vunpack.c.h.b16 %v124
    %v217 = vunpack.c.l.b16 %v125
    %v218 = vunpack.c.h.b16 %v125
    %v219 = vunpack.c.l.b16 %v126
    %v220 = vunpack.c.h.b16 %v126
    %v221 = vunpack.c.l.b16 %v127
    %v222 = vunpack.c.h.b16 %v127
    %v223 = vunpack.c.l.b16 %v128
    %v224 = vunpack.c.h.b16 %v128
    %v225 = vpack.c.b16 %v165, %v161
    %v226 = vpack.c.b16 %v166, %v162
    %v227 = vpack.c.b16 %v167, %v163
    %v228 = vpack.c.b16 %v168, %v164
    %v229 = vpack.c.b16 %v173, %v169
    %v230 = vpack.c.b16 %v174, %v170
    %v231 = vpack.c.b16 %v175, %v171
    %v232 = vpack.c.b16 %v176, %v172
    %v233 = vpack.c.b16 %v181, %v177
    %v234 = vpack.c.b16 %v182, %v178
    %v235 = vpack.c.b16 %v183, %v179
    %v236 = vpack.c.b16 %v184, %v180
    %v237 = vpack.c.b16 %v189, %v185
    %v238 = vpack.c.b16 %v190, %v186
    %v239 = vpack.c.b16 %v191, %v187
    %v240 = vpack.c.b16 %v192, %v188
    %v241 = vpack.c.b16 %v197, %v193
    %v242 = vpack.c.b16 %v198, %v194
    %v243 = vpack.c.b16 %v199, %v195
    %v244 = vpack.c.b16 %v200, %v196
    %v245 = vpack.c.b16 %v205, %v201
    %v246 = vpack.c.b16 %v206, %v202
    %v247 = vpack.c.b16 %v207, %v203
    %v248 = vpack.c.b16 %v208, %v204
    %v249 = vpack.c.b16 %v213, %v209
    %v250 = vpack.c.b16 %v214, %v210
    %v251 = vpack.c.b16 %v215, %v211
    %v252 = vpack.c.b16 %v216, %v212
    %v253 = vpack.c.b16 %v221, %v217
    %v254 = vpack.c.b16 %v222, %v218
    %v255 = vpack.c.b16 %v223, %v219
    %v256 = vpack.c.b16 %v224, %v220
    %289 = vmatpush.bf16.msra.mxu0 %v253
    %290 = vmatpush.bf16.msra.mxu0 %v249
    %291 = vmatpush.bf16.msra.mxu0 %v245
    %292 = vmatpush.bf16.msra.mxu0 %v241
    %293 = vmatpush.bf16.msra.mxu0 %v237
    %294 = vmatpush.bf16.msra.mxu0 %v233
    %295 = vmatpush.bf16.msra.mxu0 %v229
    %296 = vmatpush.bf16.msra.mxu0 %v225
    %297 = vmatmul.bf16.gmra.mxu0 %v96
    %v298 = vpop.f32.mrf.mxu0
    %v299 = vadd.f32 0.0, %v298
    %v300 = vpop.f32.mrf.mxu0
    %301 = vdwg.mxu0
    %302 = vmatpush.bf16.msra.mxu0 %v254
    %303 = vmatpush.bf16.msra.mxu0 %v250
    %304 = vmatpush.bf16.msra.mxu0 %v246
    %305 = vmatpush.bf16.msra.mxu0 %v242
    %306 = vmatpush.bf16.msra.mxu0 %v238
    %307 = vmatpush.bf16.msra.mxu0 %v234
    %308 = vmatpush.bf16.msra.mxu0 %v230
    %309 = vmatpush.bf16.msra.mxu0 %v226
    %310 = vmatmul.bf16.gmra.mxu0 %v96
    %v311 = vpop.f32.mrf.mxu0
    %v312 = vadd.f32 0.0, %v311
    %v313 = vpop.f32.mrf.mxu0
    %314 = vdwg.mxu0
    %315 = vmatpush.bf16.msra.mxu0 %v255
    %316 = vmatpush.bf16.msra.mxu0 %v251
    %317 = vmatpush.bf16.msra.mxu0 %v247
    %318 = vmatpush.bf16.msra.mxu0 %v243
    %319 = vmatpush.bf16.msra.mxu0 %v239
    %320 = vmatpush.bf16.msra.mxu0 %v235
    %321 = vmatpush.bf16.msra.mxu0 %v231
    %322 = vmatpush.bf16.msra.mxu0 %v227
    %323 = vmatmul.bf16.gmra.mxu0 %v96
    %v324 = vpop.f32.mrf.mxu0
    %v325 = vadd.f32 0.0, %v324
    %v326 = vpop.f32.mrf.mxu0
    %327 = vdwg.mxu0
    %328 = vmatpush.bf16.msra.mxu0 %v256
    %329 = vmatpush.bf16.msra.mxu0 %v252
    %330 = vmatpush.bf16.msra.mxu0 %v248
    %331 = vmatpush.bf16.msra.mxu0 %v244
    %332 = vmatpush.bf16.msra.mxu0 %v240
    %333 = vmatpush.bf16.msra.mxu0 %v236
    %334 = vmatpush.bf16.msra.mxu0 %v232
    %335 = vmatpush.bf16.msra.mxu0 %v228
    %336 = vmatmul.bf16.gmra.mxu0 %v96
    %v337 = vpop.f32.mrf.mxu0
    %v338 = vadd.f32 0.0, %v337
    %v339 = vpop.f32.mrf.mxu0
    %340 = vdwg.mxu0
    %v341 = vld [vmem:[%s1] sm:$0xff]
    %vm342 = vcmp.eq.s32.totalorder %v341, 1
    %v343 = vsel %vm342, 1, 0
    %344 = vset.pattern.permute.xlu0 0
    %345 = vperm.xlu0 %344, %v343
    %v346 = vpop.permute.xlu0 %345
    %vm347 = vcmp.eq.s32.totalorder %v346, 1
    %v348 = vsel %vm347, %v312, %v299
    %vm349 = vcmp.eq.s32.totalorder %v341, 2
    %v350 = vsel %vm349, 1, 0
    %351 = vset.pattern.permute.xlu0 0
    %352 = vperm.xlu0 %351, %v350
    %v353 = vpop.permute.xlu0 %352
    %vm354 = vcmp.eq.s32.totalorder %v353, 1
    %v355 = vsel %vm354, %v325, %v348
    %vm356 = vcmp.eq.s32.totalorder %v341, 3
    %v357 = vsel %vm356, 1, 0
    %358 = vset.pattern.permute.xlu0 0
    %359 = vperm.xlu0 %358, %v357
    %v360 = vpop.permute.xlu0 %359
    %vm361 = vcmp.eq.s32.totalorder %v360, 1
    %v362 = vsel %vm361, %v338, %v355
    %v363 = vld [vmem:[%s5] sm:$0xff]
    %v364 = vadd.f32 %v362, %v363
    %v365 = vsub.f32 0.0, %v364
    %v366 = vmul.f32 %v365, 1.442695
    %v367 = vpow.pop %v366
    %v368 = vadd.f32 %v367, 1.0
    %v369 = vrcp.pop %v368
    %370 = vst [vmem:[#allocation7] sm:$0xff] %v369
    // Predicated region
    $region34: #{tpu_custom_call.1} parent=1 // pred_check
      _
    $region35: #{tpu_custom_call.1} parent=1 // pred_check_branch
      %372 = sbr.rel (0) target = $region37
    $region36: #{tpu_custom_call.1} parent=1 // pred_region
      %374 = vsyncadd [#allocation4], 0
      %s376 = sshll.u32 [#allocation7], 4
      %s377 = int_to_ptr.vmem [resolvable:$true] %s376
      %s378 = sshll.u32 %s6, 4
      %s379 = int_to_ptr.hbm [resolvable:$true] %s378
      %381 = dma.vmem_to_hbm [thread:$0]  %s377, 128, %s379, [#allocation4]
    $region37: #{tpu_custom_call.1} parent=1 // pred_fallthru
      _
    // Predicated region
    $region38: #{tpu_custom_call.1} parent=1 // pred_check
      _
    $region39: #{tpu_custom_call.1} parent=1 // pred_check_branch
      %383 = sbr.rel (0) target = $region41
    $region40: #{tpu_custom_call.1} parent=1 // pred_region
      %385 = dma.done [#allocation4], 128
    $region41: #{tpu_custom_call.1} parent=1 // pred_fallthru
      _
    %386 = vsyncpa [#allocation3], 1
    %387 = vsyncpa [#allocation6], 1
    %388 = vsyncpa [#allocation4], 1

// kernel: tpu_custom_call.1
$region0: #{tpu_custom_call.1}
  #allocation0 [shape = 'u32[]', space=smem, size = 0x4, offset = 0x4, fixed_abs, tag = 'smem constant byte address 0x4 - core index']
  #allocation1 [shape = 'u32[72,128]{1,0:T(1,128)}', space=vmem, size = 0x9000, scoped, tag = 'internal scratch']
  %s0 = inlined_call_operand.vmem [shape: bf16[8,32], index: 0, kind: input, shape index: {}]
  %s1 = inlined_call_operand.vmem [shape: s32[8,1], index: 1, kind: input, shape index: {}]
  %s2 = inlined_call_operand.hbm [shape: bf16[32,128], index: 2, kind: input, shape index: {}]
  %s3 = inlined_call_operand.vmem [shape: f32[1,128], index: 3, kind: input, shape index: {}]
  %s4 = inlined_call_operand.hbm [shape: bf16[128,512], index: 4, kind: input, shape index: {}]
  %s5 = inlined_call_operand.vmem [shape: f32[8,128], index: 5, kind: input, shape index: {}]
  %s6 = inlined_call_operand.hbm [shape: f32[8,128], index: 6, kind: output, shape index: {}]
  %s7 = sld [smem:[#allocation0]]
  $region42: #{tpu_custom_call.1} parent=0
    _
  %s9 = ssub.s32 1, %s7
  %s10 = scalar_select 0, %s9, %s7
  $region1: #{tpu_custom_call.1} parent=0
    #allocation2 [shape = 'u8[8192]{0}', space=vmem, size = 0x2000, scoped, tag = 'input window, operand 2, single buffered']
    #allocation3 [shape = 's32[1]{0}', space=sflag, size = 0x4, scoped, tag = 'scoped memory for tpu_custom_call.1']
    #allocation4 [shape = 's32[1]{0}', space=sflag, size = 0x4, scoped, tag = 'scoped memory for tpu_custom_call.1']
    #allocation5 [shape = 'u8[131072]{0}', space=vmem, size = 0x20000, scoped, tag = 'input window, operand 4, single buffered']
    #allocation6 [shape = 's32[1]{0}', space=sflag, size = 0x4, scoped, tag = 'scoped memory for tpu_custom_call.1']
    #allocation7 [shape = 'u8[4096]{0}', space=vmem, size = 0x1000, scoped, tag = 'output window, operand 0, single buffered']
    %11 = vsyncpa [#allocation3], 0
    %12 = vsyncpa [#allocation6], 0
    %13 = vsyncpa [#allocation4], 0
    // Predicated region
    $region2: #{tpu_custom_call.1} parent=1 // pred_check
      _
    $region3: #{tpu_custom_call.1} parent=1 // pred_check_branch
      %15 = sbr.rel (0) target = $region5
    $region4: #{tpu_custom_call.1} parent=1 // pred_region
      _
    $region5: #{tpu_custom_call.1} parent=1 // pred_fallthru
      _
    // Predicated region
    $region6: #{tpu_custom_call.1} parent=1 // pred_check
      _
    $region7: #{tpu_custom_call.1} parent=1 // pred_check_branch
      %17 = sbr.rel (0) target = $region9
    $region8: #{tpu_custom_call.1} parent=1 // pred_region
      _
    $region9: #{tpu_custom_call.1} parent=1 // pred_fallthru
      _
    // Predicated region
    $region10: #{tpu_custom_call.1} parent=1 // pred_check
      _
    $region11: #{tpu_custom_call.1} parent=1 // pred_check_branch
      %19 = sbr.rel (0) target = $region13
    $region12: #{tpu_custom_call.1} parent=1 // pred_region
      %21 = vsyncadd [#allocation3], 0
      %s22 = sshll.u32 %s2, 4
      %s23 = int_to_ptr.hbm [resolvable:$true] %s22
      %s24 = sshll.u32 [#allocation2], 4
      %s25 = int_to_ptr.vmem [resolvable:$true] %s24
      %30 = dma.hbm_to_vmem [thread:$0]  %s23, 256, %s25, [#allocation3], 64, 64, 4
    $region13: #{tpu_custom_call.1} parent=1 // pred_fallthru
      _
    // Predicated region
    $region14: #{tpu_custom_call.1} parent=1 // pred_check
      _
    $region15: #{tpu_custom_call.1} parent=1 // pred_check_branch
      %32 = sbr.rel (0) target = $region17
    $region16: #{tpu_custom_call.1} parent=1 // pred_region
      _
    $region17: #{tpu_custom_call.1} parent=1 // pred_fallthru
      _
    // Predicated region
    $region18: #{tpu_custom_call.1} parent=1 // pred_check
      _
    $region19: #{tpu_custom_call.1} parent=1 // pred_check_branch
      %34 = sbr.rel (0) target = $region21
    $region20: #{tpu_custom_call.1} parent=1 // pred_region
      %36 = vsyncadd [#allocation6], 0
      %s37 = sshll.u32 %s4, 4
      %s38 = int_to_ptr.hbm [resolvable:$true] %s37
      %s39 = sshll.u32 [#allocation5], 4
      %s40 = int_to_ptr.vmem [resolvable:$true] %s39
      %45 = dma.hbm_to_vmem [thread:$0]  %s38, 4096, %s40, [#allocation6], 256, 256, 16
    $region21: #{tpu_custom_call.1} parent=1 // pred_fallthru
      _
    // Predicated region
    $region22: #{tpu_custom_call.1} parent=1 // pred_check
      _
    $region23: #{tpu_custom_call.1} parent=1 // pred_check_branch
      %47 = sbr.rel (0) target = $region25
    $region24: #{tpu_custom_call.1} parent=1 // pred_region
      _
    $region25: #{tpu_custom_call.1} parent=1 // pred_fallthru
      _
    // Predicated region
    $region26: #{tpu_custom_call.1} parent=1 // pred_check
      _
    $region27: #{tpu_custom_call.1} parent=1 // pred_check_branch
      %49 = sbr.rel (0) target = $region29
    $region28: #{tpu_custom_call.1} parent=1 // pred_region
      %51 = dma.done [#allocation3], 256
    $region29: #{tpu_custom_call.1} parent=1 // pred_fallthru
      _
    // Predicated region
    $region30: #{tpu_custom_call.1} parent=1 // pred_check
      _
    $region31: #{tpu_custom_call.1} parent=1 // pred_check_branch
      %53 = sbr.rel (0) target = $region33
    $region32: #{tpu_custom_call.1} parent=1 // pred_region
      %55 = dma.done [#allocation6], 4096
    $region33: #{tpu_custom_call.1} parent=1 // pred_fallthru
      _
    %v57 = vld [vmem:[%s0] sm:$0xf]
    %v58 = vld [vmem:[#allocation2] sm:$0xf]
    %v59 = vld [vmem:[#allocation2 + $0x4] sm:$0xf]
    %v60 = vld [vmem:[#allocation2 + $0x8] sm:$0xf]
    %v61 = vld [vmem:[#allocation2 + $0xc] sm:$0xf]
    %v62 = vld [vmem:[%s3] sm:$0x1]
    %v64 = vperm.slane %v62, 0
    %v70 = vunpack.c.l.b16 %v58
    %v71 = vunpack.c.l.b16 %v59
    %v72 = vunpack.c.l.b16 %v60
    %v73 = vunpack.c.l.b16 %v61
    %v74 = vpack.c.b16 %v71, %v70
    %v75 = vpack.c.b16 %v73, %v72
    %vm78 = vcmask 261120
    %v80 = vsel %vm78, %v57, 0
    %82 = vmatpush.bf16.msra.mxu0 0
    %83 = vmatpush.bf16.msra.mxu0 0
    %84 = vmatpush.bf16.msra.mxu0 0
    %85 = vmatpush.bf16.msra.mxu0 0
    %86 = vmatpush.bf16.msra.mxu0 0
    %87 = vmatpush.bf16.msra.mxu0 0
    %88 = vmatpush.bf16.msra.mxu0 %v75
    %89 = vmatpush.bf16.msra.mxu0 %v74
    %90 = vmatmul.bf16.gmra.mxu0 %v80
    %v91 = vpop.f32.mrf.mxu0
    %v92 = vadd.f32 %v64, %v91
    %v93 = vpop.f32.mrf.mxu0
    %94 = vdwg.mxu0
    %v95 = vmax.f32 %v92, 0.0
    %v96 = vpack.c.bf16 %v95, %v95
    %v97 = vld [vmem:[#allocation5] sm:$0xff]
    %v98 = vld [vmem:[#allocation5 + $0x8] sm:$0xff]
    %v99 = vld [vmem:[#allocation5 + $0x10] sm:$0xff]
    %v100 = vld [vmem:[#allocation5 + $0x18] sm:$0xff]
    %v101 = vld [vmem:[#allocation5 + $0x20] sm:$0xff]
    %v102 = vld [vmem:[#allocation5 + $0x28] sm:$0xff]
    %v103 = vld [vmem:[#allocation5 + $0x30] sm:$0xff]
    %v104 = vld [vmem:[#allocation5 + $0x38] sm:$0xff]
    %v105 = vld [vmem:[#allocation5 + $0x40] sm:$0xff]
    %v106 = vld [vmem:[#allocation5 + $0x48] sm:$0xff]
    %v107 = vld [vmem:[#allocation5 + $0x50] sm:$0xff]
    %v108 = vld [vmem:[#allocation5 + $0x58] sm:$0xff]
    %v109 = vld [vmem:[#allocation5 + $0x60] sm:$0xff]
    %v110 = vld [vmem:[#allocation5 + $0x68] sm:$0xff]
    %v111 = vld [vmem:[#allocation5 + $0x70] sm:$0xff]
    %v112 = vld [vmem:[#allocation5 + $0x78] sm:$0xff]
    %v113 = vld [vmem:[#allocation5 + $0x80] sm:$0xff]
    %v114 = vld [vmem:[#allocation5 + $0x88] sm:$0xff]
    %v115 = vld [vmem:[#allocation5 + $0x90] sm:$0xff]
    %v116 = vld [vmem:[#allocation5 + $0x98] sm:$0xff]
    %v117 = vld [vmem:[#allocation5 + $0xa0] sm:$0xff]
    %v118 = vld [vmem:[#allocation5 + $0xa8] sm:$0xff]
    %v119 = vld [vmem:[#allocation5 + $0xb0] sm:$0xff]
    %v120 = vld [vmem:[#allocation5 + $0xb8] sm:$0xff]
    %v121 = vld [vmem:[#allocation5 + $0xc0] sm:$0xff]
    %v122 = vld [vmem:[#allocation5 + $0xc8] sm:$0xff]
    %v123 = vld [vmem:[#allocation5 + $0xd0] sm:$0xff]
    %v124 = vld [vmem:[#allocation5 + $0xd8] sm:$0xff]
    %v125 = vld [vmem:[#allocation5 + $0xe0] sm:$0xff]
    %v126 = vld [vmem:[#allocation5 + $0xe8] sm:$0xff]
    %v127 = vld [vmem:[#allocation5 + $0xf0] sm:$0xff]
    %v128 = vld [vmem:[#allocation5 + $0xf8] sm:$0xff]
    %v161 = vunpack.c.l.b16 %v97
    %v162 = vunpack.c.h.b16 %v97
    %v163 = vunpack.c.l.b16 %v98
    %v164 = vunpack.c.h.b16 %v98
    %v165 = vunpack.c.l.b16 %v99
    %v166 = vunpack.c.h.b16 %v99
    %v167 = vunpack.c.l.b16 %v100
    %v168 = vunpack.c.h.b16 %v100
    %v169 = vunpack.c.l.b16 %v101
    %v170 = vunpack.c.h.b16 %v101
    %v171 = vunpack.c.l.b16 %v102
    %v172 = vunpack.c.h.b16 %v102
    %v173 = vunpack.c.l.b16 %v103
    %v174 = vunpack.c.h.b16 %v103
    %v175 = vunpack.c.l.b16 %v104
    %v176 = vunpack.c.h.b16 %v104
    %v177 = vunpack.c.l.b16 %v105
    %v178 = vunpack.c.h.b16 %v105
    %v179 = vunpack.c.l.b16 %v106
    %v180 = vunpack.c.h.b16 %v106
    %v181 = vunpack.c.l.b16 %v107
    %v182 = vunpack.c.h.b16 %v107
    %v183 = vunpack.c.l.b16 %v108
    %v184 = vunpack.c.h.b16 %v108
    %v185 = vunpack.c.l.b16 %v109
    %v186 = vunpack.c.h.b16 %v109
    %v187 = vunpack.c.l.b16 %v110
    %v188 = vunpack.c.h.b16 %v110
    %v189 = vunpack.c.l.b16 %v111
    %v190 = vunpack.c.h.b16 %v111
    %v191 = vunpack.c.l.b16 %v112
    %v192 = vunpack.c.h.b16 %v112
    %v193 = vunpack.c.l.b16 %v113
    %v194 = vunpack.c.h.b16 %v113
    %v195 = vunpack.c.l.b16 %v114
    %v196 = vunpack.c.h.b16 %v114
    %v197 = vunpack.c.l.b16 %v115
    %v198 = vunpack.c.h.b16 %v115
    %v199 = vunpack.c.l.b16 %v116
    %v200 = vunpack.c.h.b16 %v116
    %v201 = vunpack.c.l.b16 %v117
    %v202 = vunpack.c.h.b16 %v117
    %v203 = vunpack.c.l.b16 %v118
    %v204 = vunpack.c.h.b16 %v118
    %v205 = vunpack.c.l.b16 %v119
    %v206 = vunpack.c.h.b16 %v119
    %v207 = vunpack.c.l.b16 %v120
    %v208 = vunpack.c.h.b16 %v120
    %v209 = vunpack.c.l.b16 %v121
    %v210 = vunpack.c.h.b16 %v121
    %v211 = vunpack.c.l.b16 %v122
    %v212 = vunpack.c.h.b16 %v122
    %v213 = vunpack.c.l.b16 %v123
    %v214 = vunpack.c.h.b16 %v123
    %v215 = vunpack.c.l.b16 %v124
    %v216 = vunpack.c.h.b16 %v124
    %v217 = vunpack.c.l.b16 %v125
    %v218 = vunpack.c.h.b16 %v125
    %v219 = vunpack.c.l.b16 %v126
    %v220 = vunpack.c.h.b16 %v126
    %v221 = vunpack.c.l.b16 %v127
    %v222 = vunpack.c.h.b16 %v127
    %v223 = vunpack.c.l.b16 %v128
    %v224 = vunpack.c.h.b16 %v128
    %v225 = vpack.c.b16 %v165, %v161
    %v226 = vpack.c.b16 %v166, %v162
    %v227 = vpack.c.b16 %v167, %v163
    %v228 = vpack.c.b16 %v168, %v164
    %v229 = vpack.c.b16 %v173, %v169
    %v230 = vpack.c.b16 %v174, %v170
    %v231 = vpack.c.b16 %v175, %v171
    %v232 = vpack.c.b16 %v176, %v172
    %v233 = vpack.c.b16 %v181, %v177
    %v234 = vpack.c.b16 %v182, %v178
    %v235 = vpack.c.b16 %v183, %v179
    %v236 = vpack.c.b16 %v184, %v180
    %v237 = vpack.c.b16 %v189, %v185
    %v238 = vpack.c.b16 %v190, %v186
    %v239 = vpack.c.b16 %v191, %v187
    %v240 = vpack.c.b16 %v192, %v188
    %v241 = vpack.c.b16 %v197, %v193
    %v242 = vpack.c.b16 %v198, %v194
    %v243 = vpack.c.b16 %v199, %v195
    %v244 = vpack.c.b16 %v200, %v196
    %v245 = vpack.c.b16 %v205, %v201
    %v246 = vpack.c.b16 %v206, %v202
    %v247 = vpack.c.b16 %v207, %v203
    %v248 = vpack.c.b16 %v208, %v204
    %v249 = vpack.c.b16 %v213, %v209
    %v250 = vpack.c.b16 %v214, %v210
    %v251 = vpack.c.b16 %v215, %v211
    %v252 = vpack.c.b16 %v216, %v212
    %v253 = vpack.c.b16 %v221, %v217
    %v254 = vpack.c.b16 %v222, %v218
    %v255 = vpack.c.b16 %v223, %v219
    %v256 = vpack.c.b16 %v224, %v220
    %289 = vmatpush.bf16.msra.mxu0 %v253
    %290 = vmatpush.bf16.msra.mxu0 %v249
    %291 = vmatpush.bf16.msra.mxu0 %v245
    %292 = vmatpush.bf16.msra.mxu0 %v241
    %293 = vmatpush.bf16.msra.mxu0 %v237
    %294 = vmatpush.bf16.msra.mxu0 %v233
    %295 = vmatpush.bf16.msra.mxu0 %v229
    %296 = vmatpush.bf16.msra.mxu0 %v225
    %297 = vmatmul.bf16.gmra.mxu0 %v96
    %v298 = vpop.f32.mrf.mxu0
    %v299 = vadd.f32 0.0, %v298
    %v300 = vpop.f32.mrf.mxu0
    %301 = vdwg.mxu0
    %302 = vmatpush.bf16.msra.mxu0 %v254
    %303 = vmatpush.bf16.msra.mxu0 %v250
    %304 = vmatpush.bf16.msra.mxu0 %v246
    %305 = vmatpush.bf16.msra.mxu0 %v242
    %306 = vmatpush.bf16.msra.mxu0 %v238
    %307 = vmatpush.bf16.msra.mxu0 %v234
    %308 = vmatpush.bf16.msra.mxu0 %v230
    %309 = vmatpush.bf16.msra.mxu0 %v226
    %310 = vmatmul.bf16.gmra.mxu0 %v96
    %v311 = vpop.f32.mrf.mxu0
    %v312 = vadd.f32 0.0, %v311
    %v313 = vpop.f32.mrf.mxu0
    %314 = vdwg.mxu0
    %315 = vmatpush.bf16.msra.mxu0 %v255
    %316 = vmatpush.bf16.msra.mxu0 %v251
    %317 = vmatpush.bf16.msra.mxu0 %v247
    %318 = vmatpush.bf16.msra.mxu0 %v243
    %319 = vmatpush.bf16.msra.mxu0 %v239
    %320 = vmatpush.bf16.msra.mxu0 %v235
    %321 = vmatpush.bf16.msra.mxu0 %v231
    %322 = vmatpush.bf16.msra.mxu0 %v227
    %323 = vmatmul.bf16.gmra.mxu0 %v96
    %v324 = vpop.f32.mrf.mxu0
    %v325 = vadd.f32 0.0, %v324
    %v326 = vpop.f32.mrf.mxu0
    %327 = vdwg.mxu0
    %328 = vmatpush.bf16.msra.mxu0 %v256
    %329 = vmatpush.bf16.msra.mxu0 %v252
    %330 = vmatpush.bf16.msra.mxu0 %v248
    %331 = vmatpush.bf16.msra.mxu0 %v244
    %332 = vmatpush.bf16.msra.mxu0 %v240
    %333 = vmatpush.bf16.msra.mxu0 %v236
    %334 = vmatpush.bf16.msra.mxu0 %v232
    %335 = vmatpush.bf16.msra.mxu0 %v228
    %336 = vmatmul.bf16.gmra.mxu0 %v96
    %v337 = vpop.f32.mrf.mxu0
    %v338 = vadd.f32 0.0, %v337
    %v339 = vpop.f32.mrf.mxu0
    %340 = vdwg.mxu0
    %v341 = vld [vmem:[%s1] sm:$0xff]
    %vm342 = vcmp.eq.s32.totalorder %v341, 1
    %v343 = vsel %vm342, 1, 0
    %344 = vset.pattern.permute.xlu0 0
    %345 = vperm.xlu0 %344, %v343
    %v346 = vpop.permute.xlu0 %345
    %vm347 = vcmp.eq.s32.totalorder %v346, 1
    %v348 = vsel %vm347, %v312, %v299
    %vm349 = vcmp.eq.s32.totalorder %v341, 2
    %v350 = vsel %vm349, 1, 0
    %351 = vset.pattern.permute.xlu0 0
    %352 = vperm.xlu0 %351, %v350
    %v353 = vpop.permute.xlu0 %352
    %vm354 = vcmp.eq.s32.totalorder %v353, 1
    %v355 = vsel %vm354, %v325, %v348
    %vm356 = vcmp.eq.s32.totalorder %v341, 3
    %v357 = vsel %vm356, 1, 0
    %358 = vset.pattern.permute.xlu0 0
    %359 = vperm.xlu0 %358, %v357
    %v360 = vpop.permute.xlu0 %359
    %vm361 = vcmp.eq.s32.totalorder %v360, 1
    %v362 = vsel %vm361, %v338, %v355
    %v363 = vld [vmem:[%s5] sm:$0xff]
    %v364 = vadd.f32 %v362, %v363
    %v365 = vsub.f32 0.0, %v364
    %v366 = vmul.f32 %v365, 1.442695
    %v367 = vpow.pop %v366
    %v368 = vadd.f32 %v367, 1.0
    %v369 = vrcp.pop %v368
    %370 = vst [vmem:[#allocation7] sm:$0xff] %v369
    // Predicated region
    $region34: #{tpu_custom_call.1} parent=1 // pred_check
      _
    $region35: #{tpu_custom_call.1} parent=1 // pred_check_branch
      %372 = sbr.rel (0) target = $region37
    $region36: #{tpu_custom_call.1} parent=1 // pred_region
      %374 = vsyncadd [#allocation4], 0
      %s376 = sshll.u32 [#allocation7], 4
      %s377 = int_to_ptr.vmem [resolvable:$true] %s376
      %s378 = sshll.u32 %s6, 4
      %s379 = int_to_ptr.hbm [resolvable:$true] %s378
      %381 = dma.vmem_to_hbm [thread:$0]  %s377, 128, %s379, [#allocation4]
    $region37: #{tpu_custom_call.1} parent=1 // pred_fallthru
      _
    // Predicated region
    $region38: #{tpu_custom_call.1} parent=1 // pred_check
      _
    $region39: #{tpu_custom_call.1} parent=1 // pred_check_branch
      %383 = sbr.rel (0) target = $region41
    $region40: #{tpu_custom_call.1} parent=1 // pred_region
      %385 = dma.done [#allocation4], 128
    $region41: #{tpu_custom_call.1} parent=1 // pred_fallthru
      _
    %386 = vsyncpa [#allocation3], 1
    %387 = vsyncpa [#allocation6], 1
    %388 = vsyncpa [#allocation4], 1

</llo_original>
